<compile_context>
chip_gen: v5e
topology: v5e:2x2
jax: 0.10.0
libtpu: 0.0.40
codegen_flags: <defaults>
</compile_context>

<pallas_src>
import jax
import jax.numpy as jnp
from jax.experimental import pallas as pl
from jax.experimental.pallas import tpu as pltpu

NUM_FEATURES = 28
OUTPUT_DIM = 4
OUT_LANES = 8        # OUTPUT_DIM rounded up to a sublane multiple; padding lanes masked


def _round_up(x, m):
    return ((x + m - 1) // m) * m


def net_kernel(x_ref, w0_ref, b0_ref, w1_ref, b1_ref, w2_ref, b2_ref, o_ref):
    # x arrives as f32 from HBM; cast to bf16 in VMEM (VPU) so the MXU gets bf16 operands.
    x = x_ref[...].astype(jnp.bfloat16)                               # (tb, 28)

    # dense0 + ReLU: bf16 x bf16 -> f32 accumulation on the MXU, bias/ReLU in f32.
    h0 = jnp.dot(x, w0_ref[...], preferred_element_type=jnp.float32) + b0_ref[...]
    h0 = jnp.maximum(h0, 0.0)                                         # (tb, H) f32

    # TODO(synk): nn.Dropout(p=0.1) is a no-op at inference; training-mode masking
    # (pltpu.prng_seed + prng_random_bits, scale 1/(1-p)) is not implemented.

    # dense1 + ReLU on an 8-wide slab (only OUTPUT_DIM=4 lanes are real).
    h1 = jnp.dot(h0.astype(jnp.bfloat16), w1_ref[...],
                 preferred_element_type=jnp.float32) + b1_ref[...]    # (tb, 8)
    h1 = jnp.maximum(h1, 0.0)

    # output linear + softmax over the live OUTPUT_DIM lanes; padding lanes are
    # masked to -inf so they contribute exp(-inf) = 0 to the denominator.
    logits = jnp.dot(h1.astype(jnp.bfloat16), w2_ref[...],
                     preferred_element_type=jnp.float32) + b2_ref[...]  # (tb, 8)
    lane = jax.lax.broadcasted_iota(jnp.int32, logits.shape, 1)
    logits = jnp.where(lane < OUTPUT_DIM, logits, -jnp.inf)
    m = jnp.max(logits, axis=-1, keepdims=True)
    e = jnp.exp(logits - m)
    denom = jnp.sum(e, axis=-1, keepdims=True)
    o_ref[...] = e * pl.reciprocal(denom, approx=True)                # EUP vrcp


def net_forward(x, params):
    w0, b0, w1, b1, w2, b2 = params
    batch = x.shape[0]
    num_neurons = w0.shape[1]
    H = max(128, _round_up(num_neurons, 128))     # lane-dense hidden width
    OL = OUT_LANES

    # One-time (tiny) param padding/casting: weights bf16, biases f32.
    w0p = jnp.pad(w0, ((0, 0), (0, H - num_neurons))).astype(jnp.bfloat16)        # (28, H)
    b0p = jnp.pad(b0, ((0, 0), (0, H - num_neurons))).astype(jnp.float32)         # (1, H)
    w1p = jnp.pad(w1, ((0, H - num_neurons), (0, OL - OUTPUT_DIM))).astype(jnp.bfloat16)  # (H, 8)
    b1p = jnp.pad(b1, ((0, 0), (0, OL - OUTPUT_DIM))).astype(jnp.float32)         # (1, 8)
    w2p = jnp.pad(w2, ((0, OL - OUTPUT_DIM), (0, OL - OUTPUT_DIM))).astype(jnp.bfloat16)  # (8, 8)
    b2p = jnp.pad(b2, ((0, 0), (0, OL - OUTPUT_DIM))).astype(jnp.float32)         # (1, 8)

    # Batch tile: 8-aligned; at least 2 grid steps for moderate batches so the
    # "parallel" grid axis can shard across the two v7x TensorCores; capped at
    # 1024 rows for large batches (bigger DMAs, fewer ~0.35us grid steps,
    # intermediates stay a few MB << VMEM limits).
    batch8 = _round_up(batch, 8)
    if batch8 >= 2048:
        tb = 1024
    elif batch8 >= 16:
        tb = _round_up((batch8 + 1) // 2, 8)
    else:
        tb = batch8
    padded_batch = _round_up(batch8, tb)

    # x stays f32 in HBM (cast happens in-kernel); pad only the small 8-aligned tail.
    xin = x
    if padded_batch != batch:
        xin = jnp.pad(x, ((0, padded_batch - batch), (0, 0)))

    grid = (padded_batch // tb,)

    cost = pl.CostEstimate(
        flops=2 * padded_batch * (NUM_FEATURES * H + H * OL + OL * OL),
        transcendentals=padded_batch * OL,
        bytes_accessed=(padded_batch * NUM_FEATURES * 4                  # f32 x read
                        + padded_batch * OL * 4                          # narrow f32 output
                        + (NUM_FEATURES * H + H * OL + OL * OL) * 2      # bf16 weights (once)
                        + (H + 2 * OL) * 4),                             # f32 biases (once)
    )

    const = lambda i: (0, 0)
    out = pl.pallas_call(
        net_kernel,
        out_shape=jax.ShapeDtypeStruct((padded_batch, OL), jnp.float32),
        grid=grid,
        in_specs=[
            pl.BlockSpec((tb, NUM_FEATURES), lambda i: (i, 0)),   # batch-tiled x (pipelined)
            pl.BlockSpec((NUM_FEATURES, H), const),               # constant blocks: DMA'd once,
            pl.BlockSpec((1, H), const),                          # VMEM-resident across the grid
            pl.BlockSpec((H, OL), const),
            pl.BlockSpec((1, OL), const),
            pl.BlockSpec((OL, OL), const),
            pl.BlockSpec((1, OL), const),
        ],
        out_specs=pl.BlockSpec((tb, OL), lambda i: (i, 0)),       # narrow output slab (masked vst)
        compiler_params=pltpu.CompilerParams(
            dimension_semantics=("parallel",)),                   # megacore sharding on v7x
        cost_estimate=cost,
    )(xin, w0p, b0p, w1p, b1p, w2p, b2p)

    return out[:batch, :OUTPUT_DIM]


def init_params(key, num_neurons):
    """Deterministic init mirroring nn.Linear default (U(-1/sqrt(fan_in), 1/sqrt(fan_in))),
    with weights stored as (in_features, out_features)."""
    ks = jax.random.split(key, 6)

    def linear(kw, kb, fan_in, fan_out):
        bound = 1.0 / jnp.sqrt(fan_in)
        w = jax.random.uniform(kw, (fan_in, fan_out), jnp.float32, -bound, bound)
        b = jax.random.uniform(kb, (1, fan_out), jnp.float32, -bound, bound)
        return w, b

    w0, b0 = linear(ks[0], ks[1], NUM_FEATURES, num_neurons)
    w1, b1 = linear(ks[2], ks[3], num_neurons, OUTPUT_DIM)
    w2, b2 = linear(ks[4], ks[5], OUTPUT_DIM, OUTPUT_DIM)
    return (w0, b0, w1, b1, w2, b2)


def reference_forward(x, params):
    w0, b0, w1, b1, w2, b2 = params
    h0 = jnp.maximum(x @ w0 + b0, 0.0)
    h1 = jnp.maximum(h0 @ w1 + b1, 0.0)
    return jax.nn.softmax(h1 @ w2 + b2, axis=-1)


if __name__ == "__main__":
    key = jax.random.PRNGKey(0)
    k_x, k_p = jax.random.split(key)

    batch = 8
    num_neurons = 32  # hidden width chosen by the grid-search hyperparameter

    x = jax.random.normal(k_x, (batch, NUM_FEATURES), dtype=jnp.float32)
    params = init_params(k_p, num_neurons)

    out = net_forward(x, params)
    jax.block_until_ready(out)

    assert out.shape == (batch, OUTPUT_DIM)
    # relaxed tolerances: approx reciprocal (~1e-3 rel) + bf16 weights/activations
    assert jnp.allclose(jnp.sum(out, axis=-1), 1.0, atol=5e-3)
    ref = reference_forward(x, params)
    assert jnp.allclose(out, ref, atol=3e-2)

    print("KERNEL_OK")
</pallas_src>

<mosaic_0001>
module attributes {stable_mosaic.version = 11 : i64} {
  func.func @net_kernel(%arg0: i32, %arg1: memref<8x28xf32, #tpu.memory_space<vmem>>, %arg2: memref<28x128xbf16, #tpu.memory_space<vmem>>, %arg3: memref<1x128xf32, #tpu.memory_space<vmem>>, %arg4: memref<128x8xbf16, #tpu.memory_space<vmem>>, %arg5: memref<1x8xf32, #tpu.memory_space<vmem>>, %arg6: memref<8x8xbf16, #tpu.memory_space<vmem>>, %arg7: memref<1x8xf32, #tpu.memory_space<vmem>>, %arg8: memref<8x8xf32, #tpu.memory_space<vmem>>) attributes {dimension_semantics = [#tpu.dimension_semantics<parallel>], iteration_bounds = array<i64: 1>, scalar_prefetch = 0 : i64, scratch_operands = 0 : i64, tpu.core_type = #tpu.core_type<tc>, window_params = [{transform_indices = @transform_0, window_bounds = array<i64: 8, 28>}, {pipeline_mode = #tpu.pipeline_mode<synchronous>, transform_indices = @transform_1, window_bounds = array<i64: 28, 128>}, {pipeline_mode = #tpu.pipeline_mode<synchronous>, transform_indices = @transform_2, window_bounds = array<i64: 1, 128>}, {pipeline_mode = #tpu.pipeline_mode<synchronous>, transform_indices = @transform_3, window_bounds = array<i64: 128, 8>}, {pipeline_mode = #tpu.pipeline_mode<synchronous>, transform_indices = @transform_4, window_bounds = array<i64: 1, 8>}, {pipeline_mode = #tpu.pipeline_mode<synchronous>, transform_indices = @transform_5, window_bounds = array<i64: 8, 8>}, {pipeline_mode = #tpu.pipeline_mode<synchronous>, transform_indices = @transform_6, window_bounds = array<i64: 1, 8>}, {transform_indices = @transform_7, window_bounds = array<i64: 8, 8>}]} {
    %c0 = arith.constant 0 : index
    %c0_0 = arith.constant 0 : index
    %0 = vector.load %arg1[%c0, %c0_0] : memref<8x28xf32, #tpu.memory_space<vmem>>, vector<8x28xf32>
    %1 = arith.truncf %0 : vector<8x28xf32> to vector<8x28xbf16>
    %c0_1 = arith.constant 0 : index
    %c0_2 = arith.constant 0 : index
    %2 = vector.load %arg2[%c0_1, %c0_2] : memref<28x128xbf16, #tpu.memory_space<vmem>>, vector<28x128xbf16>
    %cst = arith.constant dense<0.000000e+00> : vector<8x128xf32>
    %3 = tpu.matmul %1, %2, %cst {dimension_numbers = #tpu.dot_dimension_numbers<[1], [0], [0], [1], [0, 0, 1, 1], [], []>} : vector<8x28xbf16>, vector<28x128xbf16>, vector<8x128xf32> -> vector<8x128xf32>
    %c0_3 = arith.constant 0 : index
    %c0_4 = arith.constant 0 : index
    %4 = vector.load %arg3[%c0_3, %c0_4] : memref<1x128xf32, #tpu.memory_space<vmem>>, vector<1x128xf32>
    %5 = vector.broadcast %4 : vector<1x128xf32> to vector<8x128xf32>
    %6 = arith.addf %3, %5 : vector<8x128xf32>
    %cst_5 = arith.constant 0.000000e+00 : f32
    %7 = vector.broadcast %cst_5 : f32 to vector<8x128xf32>
    %8 = arith.maximumf %6, %7 : vector<8x128xf32>
    %9 = arith.truncf %8 : vector<8x128xf32> to vector<8x128xbf16>
    %c0_6 = arith.constant 0 : index
    %c0_7 = arith.constant 0 : index
    %10 = vector.load %arg4[%c0_6, %c0_7] : memref<128x8xbf16, #tpu.memory_space<vmem>>, vector<128x8xbf16>
    %cst_8 = arith.constant dense<0.000000e+00> : vector<8x8xf32>
    %11 = tpu.matmul %9, %10, %cst_8 {dimension_numbers = #tpu.dot_dimension_numbers<[1], [0], [0], [1], [0, 0, 1, 1], [], []>} : vector<8x128xbf16>, vector<128x8xbf16>, vector<8x8xf32> -> vector<8x8xf32>
    %c0_9 = arith.constant 0 : index
    %c0_10 = arith.constant 0 : index
    %12 = vector.load %arg5[%c0_9, %c0_10] : memref<1x8xf32, #tpu.memory_space<vmem>>, vector<1x8xf32>
    %13 = vector.broadcast %12 : vector<1x8xf32> to vector<8x8xf32>
    %14 = arith.addf %11, %13 : vector<8x8xf32>
    %cst_11 = arith.constant 0.000000e+00 : f32
    %15 = vector.broadcast %cst_11 : f32 to vector<8x8xf32>
    %16 = arith.maximumf %14, %15 : vector<8x8xf32>
    %17 = arith.truncf %16 : vector<8x8xf32> to vector<8x8xbf16>
    %c0_12 = arith.constant 0 : index
    %c0_13 = arith.constant 0 : index
    %18 = vector.load %arg6[%c0_12, %c0_13] : memref<8x8xbf16, #tpu.memory_space<vmem>>, vector<8x8xbf16>
    %cst_14 = arith.constant dense<0.000000e+00> : vector<8x8xf32>
    %19 = tpu.matmul %17, %18, %cst_14 {dimension_numbers = #tpu.dot_dimension_numbers<[1], [0], [0], [1], [0, 0, 1, 1], [], []>} : vector<8x8xbf16>, vector<8x8xbf16>, vector<8x8xf32> -> vector<8x8xf32>
    %c0_15 = arith.constant 0 : index
    %c0_16 = arith.constant 0 : index
    %20 = vector.load %arg7[%c0_15, %c0_16] : memref<1x8xf32, #tpu.memory_space<vmem>>, vector<1x8xf32>
    %21 = vector.broadcast %20 : vector<1x8xf32> to vector<8x8xf32>
    %22 = arith.addf %19, %21 : vector<8x8xf32>
    %23 = tpu.iota {dimensions = array<i32: 1>} : vector<8x8xi32>
    %c4_i32 = arith.constant 4 : i32
    %24 = vector.broadcast %c4_i32 : i32 to vector<8x8xi32>
    %25 = arith.cmpi slt, %23, %24 : vector<8x8xi32>
    %cst_17 = arith.constant 0xFF800000 : f32
    %26 = vector.broadcast %cst_17 : f32 to vector<8x8xf32>
    %27 = arith.select %25, %22, %26 : vector<8x8xi1>, vector<8x8xf32>
    %cst_18 = arith.constant dense<0xFF800000> : vector<8xf32>
    %28 = vector.multi_reduction <maximumf>, %27, %cst_18 [1] : vector<8x8xf32> to vector<8xf32>
    %29 = vector.shape_cast %28 : vector<8xf32> to vector<8x1xf32>
    %30 = vector.broadcast %29 : vector<8x1xf32> to vector<8x8xf32>
    %31 = arith.subf %27, %30 : vector<8x8xf32>
    %32 = math.exp %31 : vector<8x8xf32>
    %cst_19 = arith.constant dense<0.000000e+00> : vector<8xf32>
    %33 = vector.multi_reduction <add>, %32, %cst_19 [1] : vector<8x8xf32> to vector<8xf32>
    %34 = vector.shape_cast %33 : vector<8xf32> to vector<8x1xf32>
    %35 = tpu.reciprocal %34 {approx = true} : vector<8x1xf32> -> vector<8x1xf32>
    %36 = vector.broadcast %35 : vector<8x1xf32> to vector<8x8xf32>
    %37 = arith.mulf %32, %36 : vector<8x8xf32>
    %c0_20 = arith.constant 0 : index
    %c0_21 = arith.constant 0 : index
    %38 = vector.load %arg8[%c0_20, %c0_21] : memref<8x8xf32, #tpu.memory_space<vmem>>, vector<8x8xf32>
    tpu.vector_store %arg8[%c0_20, %c0_21], %37 {strides = array<i32>} : memref<8x8xf32, #tpu.memory_space<vmem>>, vector<8x8xf32>,
    return
  }
  func.func @transform_0(%arg0: i32) -> (i32, i32) {
    %c0_i32 = arith.constant 0 : i32
    %c0_i32_0 = arith.constant 0 : i32
    return %arg0, %c0_i32 : i32, i32
  }
  func.func @transform_1(%arg0: i32) -> (i32, i32) {
    %c0_i32 = arith.constant 0 : i32
    %c0_i32_0 = arith.constant 0 : i32
    %c0_i32_1 = arith.constant 0 : i32
    return %c0_i32, %c0_i32_0 : i32, i32
  }
  func.func @transform_2(%arg0: i32) -> (i32, i32) {
    %c0_i32 = arith.constant 0 : i32
    %c0_i32_0 = arith.constant 0 : i32
    %c0_i32_1 = arith.constant 0 : i32
    return %c0_i32, %c0_i32_0 : i32, i32
  }
  func.func @transform_3(%arg0: i32) -> (i32, i32) {
    %c0_i32 = arith.constant 0 : i32
    %c0_i32_0 = arith.constant 0 : i32
    %c0_i32_1 = arith.constant 0 : i32
    return %c0_i32, %c0_i32_0 : i32, i32
  }
  func.func @transform_4(%arg0: i32) -> (i32, i32) {
    %c0_i32 = arith.constant 0 : i32
    %c0_i32_0 = arith.constant 0 : i32
    %c0_i32_1 = arith.constant 0 : i32
    return %c0_i32, %c0_i32_0 : i32, i32
  }
  func.func @transform_5(%arg0: i32) -> (i32, i32) {
    %c0_i32 = arith.constant 0 : i32
    %c0_i32_0 = arith.constant 0 : i32
    %c0_i32_1 = arith.constant 0 : i32
    return %c0_i32, %c0_i32_0 : i32, i32
  }
  func.func @transform_6(%arg0: i32) -> (i32, i32) {
    %c0_i32 = arith.constant 0 : i32
    %c0_i32_0 = arith.constant 0 : i32
    %c0_i32_1 = arith.constant 0 : i32
    return %c0_i32, %c0_i32_0 : i32, i32
  }
  func.func @transform_7(%arg0: i32) -> (i32, i32) {
    %c0_i32 = arith.constant 0 : i32
    %c0_i32_0 = arith.constant 0 : i32
    return %arg0, %c0_i32 : i32, i32
  }
}

</mosaic_0001>

<llo_original>
// kernel: tpu_custom_call.1
$region0: #{tpu_custom_call.1}
  #allocation0 [shape = 'u32[]', space=smem, size = 0x4, offset = 0x4, fixed_abs, tag = 'smem constant byte address 0x4 - core index']
  #allocation1 [shape = 'u32[72,128]{1,0:T(1,128)}', space=vmem, size = 0x9000, scoped, tag = 'internal scratch']
  %s0 = inlined_call_operand.vmem [shape: f32[8,28], index: 0, kind: input, shape index: {}]
  %s1 = inlined_call_operand.vmem [shape: bf16[28,128], index: 1, kind: input, shape index: {}]
  %s2 = inlined_call_operand.vmem [shape: f32[1,128], index: 2, kind: input, shape index: {}]
  %s3 = inlined_call_operand.vmem [shape: bf16[128,8], index: 3, kind: input, shape index: {}]
  %s4 = inlined_call_operand.vmem [shape: f32[1,8], index: 4, kind: input, shape index: {}]
  %s5 = inlined_call_operand.vmem [shape: bf16[8,8], index: 5, kind: input, shape index: {}]
  %s6 = inlined_call_operand.vmem [shape: f32[1,8], index: 6, kind: input, shape index: {}]
  %s7 = inlined_call_operand.hbm [shape: f32[8,8], index: 7, kind: output, shape index: {}]
  %s8 = sld [smem:[#allocation0]]
  $region38: #{tpu_custom_call.1} parent=0
    _
  %s10 = ssub.s32 1, %s8
  %s11 = scalar_select 0, %s10, %s8
  $region1: #{tpu_custom_call.1} parent=0
    #allocation2 [shape = 'u8[4096]{0}', space=vmem, size = 0x1000, scoped, tag = 'output window, operand 0, single buffered']
    #allocation3 [shape = 's32[1]{0}', space=sflag, size = 0x4, scoped, tag = 'scoped memory for tpu_custom_call.1']
    %12 = vsyncpa [#allocation3], 0
    // Predicated region
    $region2: #{tpu_custom_call.1} parent=1 // pred_check
      _
    $region3: #{tpu_custom_call.1} parent=1 // pred_check_branch
      %14 = sbr.rel (0) target = $region5
    $region4: #{tpu_custom_call.1} parent=1 // pred_region
      _
    $region5: #{tpu_custom_call.1} parent=1 // pred_fallthru
      _
    // Predicated region
    $region6: #{tpu_custom_call.1} parent=1 // pred_check
      _
    $region7: #{tpu_custom_call.1} parent=1 // pred_check_branch
      %16 = sbr.rel (0) target = $region9
    $region8: #{tpu_custom_call.1} parent=1 // pred_region
      _
    $region9: #{tpu_custom_call.1} parent=1 // pred_fallthru
      _
    // Predicated region
    $region10: #{tpu_custom_call.1} parent=1 // pred_check
      _
    $region11: #{tpu_custom_call.1} parent=1 // pred_check_branch
      %18 = sbr.rel (0) target = $region13
    $region12: #{tpu_custom_call.1} parent=1 // pred_region
      _
    $region13: #{tpu_custom_call.1} parent=1 // pred_fallthru
      _
    // Predicated region
    $region14: #{tpu_custom_call.1} parent=1 // pred_check
      _
    $region15: #{tpu_custom_call.1} parent=1 // pred_check_branch
      %20 = sbr.rel (0) target = $region17
    $region16: #{tpu_custom_call.1} parent=1 // pred_region
      _
    $region17: #{tpu_custom_call.1} parent=1 // pred_fallthru
      _
    // Predicated region
    $region18: #{tpu_custom_call.1} parent=1 // pred_check
      _
    $region19: #{tpu_custom_call.1} parent=1 // pred_check_branch
      %22 = sbr.rel (0) target = $region21
    $region20: #{tpu_custom_call.1} parent=1 // pred_region
      _
    $region21: #{tpu_custom_call.1} parent=1 // pred_fallthru
      _
    // Predicated region
    $region22: #{tpu_custom_call.1} parent=1 // pred_check
      _
    $region23: #{tpu_custom_call.1} parent=1 // pred_check_branch
      %24 = sbr.rel (0) target = $region25
    $region24: #{tpu_custom_call.1} parent=1 // pred_region
      _
    $region25: #{tpu_custom_call.1} parent=1 // pred_fallthru
      _
    // Predicated region
    $region26: #{tpu_custom_call.1} parent=1 // pred_check
      _
    $region27: #{tpu_custom_call.1} parent=1 // pred_check_branch
      %26 = sbr.rel (0) target = $region29
    $region28: #{tpu_custom_call.1} parent=1 // pred_region
      _
    $region29: #{tpu_custom_call.1} parent=1 // pred_fallthru
      _
    %v28 = vld [vmem:[%s0] sm:$0xff]
    %v29 = vpack.c.bf16 %v28, %v28
    %v30 = vld [vmem:[%s1] sm:$0xf]
    %v31 = vld [vmem:[%s1 + $0x4] sm:$0xf]
    %v32 = vld [vmem:[%s1 + $0x8] sm:$0xf]
    %v33 = vld [vmem:[%s1 + $0xc] sm:$0x3]
    %v34 = vld [vmem:[%s2] sm:$0x1]
    %v36 = vperm.slane %v34, 0
    %v42 = vunpack.c.l.b16 %v30
    %v43 = vunpack.c.l.b16 %v31
    %v44 = vunpack.c.l.b16 %v32
    %v45 = vunpack.c.l.b16 %v33
    %v46 = vpack.c.b16 %v43, %v42
    %v47 = vpack.c.b16 %v45, %v44
    %vm49 = vcmask 228352
    %v51 = vsel %vm49, %v29, 0
    %vm53 = vcmask 1045504
    %v55 = vsel %vm53, %v47, 0
    %57 = vmatpush.bf16.msra.mxu0 0
    %58 = vmatpush.bf16.msra.mxu0 0
    %59 = vmatpush.bf16.msra.mxu0 0
    %60 = vmatpush.bf16.msra.mxu0 0
    %61 = vmatpush.bf16.msra.mxu0 0
    %62 = vmatpush.bf16.msra.mxu0 0
    %63 = vmatpush.bf16.msra.mxu0 %v55
    %64 = vmatpush.bf16.msra.mxu0 %v46
    %65 = vmatmul.bf16.gmra.mxu0 %v51
    %v66 = vpop.f32.mrf.mxu0
    %v67 = vadd.f32 %v36, %v66
    %v68 = vpop.f32.mrf.mxu0
    %69 = vdwg.mxu0
    %v70 = vmax.f32 %v67, 0.0
    %v71 = vpack.c.bf16 %v70, %v70
    %v72 = vld [vmem:[%s3] sm:$0xf]
    %v73 = vld [vmem:[%s3 + $0x4] sm:$0xf]
    %v74 = vld [vmem:[%s3 + $0x8] sm:$0xf]
    %v75 = vld [vmem:[%s3 + $0xc] sm:$0xf]
    %v76 = vld [vmem:[%s3 + $0x10] sm:$0xf]
    %v77 = vld [vmem:[%s3 + $0x14] sm:$0xf]
    %v78 = vld [vmem:[%s3 + $0x18] sm:$0xf]
    %v79 = vld [vmem:[%s3 + $0x1c] sm:$0xf]
    %v80 = vld [vmem:[%s3 + $0x20] sm:$0xf]
    %v81 = vld [vmem:[%s3 + $0x24] sm:$0xf]
    %v82 = vld [vmem:[%s3 + $0x28] sm:$0xf]
    %v83 = vld [vmem:[%s3 + $0x2c] sm:$0xf]
    %v84 = vld [vmem:[%s3 + $0x30] sm:$0xf]
    %v85 = vld [vmem:[%s3 + $0x34] sm:$0xf]
    %v86 = vld [vmem:[%s3 + $0x38] sm:$0xf]
    %v87 = vld [vmem:[%s3 + $0x3c] sm:$0xf]
    %v88 = vld [vmem:[%s4] sm:$0x1]
    %v90 = vperm.slane %v88, 0
    %v108 = vunpack.c.l.b16 %v72
    %v109 = vunpack.c.l.b16 %v73
    %v110 = vunpack.c.l.b16 %v74
    %v111 = vunpack.c.l.b16 %v75
    %v112 = vunpack.c.l.b16 %v76
    %v113 = vunpack.c.l.b16 %v77
    %v114 = vunpack.c.l.b16 %v78
    %v115 = vunpack.c.l.b16 %v79
    %v116 = vunpack.c.l.b16 %v80
    %v117 = vunpack.c.l.b16 %v81
    %v118 = vunpack.c.l.b16 %v82
    %v119 = vunpack.c.l.b16 %v83
    %v120 = vunpack.c.l.b16 %v84
    %v121 = vunpack.c.l.b16 %v85
    %v122 = vunpack.c.l.b16 %v86
    %v123 = vunpack.c.l.b16 %v87
    %v124 = vpack.c.b16 %v109, %v108
    %v125 = vpack.c.b16 %v111, %v110
    %v126 = vpack.c.b16 %v113, %v112
    %v127 = vpack.c.b16 %v115, %v114
    %v128 = vpack.c.b16 %v117, %v116
    %v129 = vpack.c.b16 %v119, %v118
    %v130 = vpack.c.b16 %v121, %v120
    %v131 = vpack.c.b16 %v123, %v122
    %140 = vmatpush.bf16.msra.mxu0 %v131
    %141 = vmatpush.bf16.msra.mxu0 %v130
    %142 = vmatpush.bf16.msra.mxu0 %v129
    %143 = vmatpush.bf16.msra.mxu0 %v128
    %144 = vmatpush.bf16.msra.mxu0 %v127
    %145 = vmatpush.bf16.msra.mxu0 %v126
    %146 = vmatpush.bf16.msra.mxu0 %v125
    %147 = vmatpush.bf16.msra.mxu0 %v124
    %148 = vmatmul.bf16.gmra.mxu0 %v71
    %v149 = vpop.f32.mrf.mxu0
    %v150 = vadd.f32 %v90, %v149
    %v151 = vpop.f32.mrf.mxu0
    %152 = vdwg.mxu0
    %v153 = vmax.f32 %v150, 0.0
    %v154 = vpack.c.bf16 %v153, %v153
    %v155 = vld [vmem:[%s5] sm:$0xf]
    %v156 = vld [vmem:[%s6] sm:$0x1]
    %v158 = vperm.slane %v156, 0
    %vm160 = vcmask 64512
    %v162 = vsel %vm160, %v154, 0
    %vm164 = vcmask 1043456
    %v166 = vsel %vm164, %v155, 0
    %168 = vmatpush.bf16.msra.mxu0 0
    %169 = vmatpush.bf16.msra.mxu0 0
    %170 = vmatpush.bf16.msra.mxu0 0
    %171 = vmatpush.bf16.msra.mxu0 0
    %172 = vmatpush.bf16.msra.mxu0 0
    %173 = vmatpush.bf16.msra.mxu0 0
    %174 = vmatpush.bf16.msra.mxu0 0
    %175 = vmatpush.bf16.msra.mxu0 %v166
    %176 = vmatmul.bf16.gmra.mxu0 %v162
    %v177 = vpop.f32.mrf.mxu0
    %v178 = vadd.f32 %v158, %v177
    %v179 = vpop.f32.mrf.mxu0
    %180 = vdwg.mxu0
    %v181 = vlaneseq
    %v182 = vand.u32 %v181, 127
    %vm183 = vcmp.lt.s32.totalorder %v182, 4
    %v184 = vsel %vm183, %v178, -inf
    %v185 = vsel %vm160, %v184, -inf
    %186 = vmax.xlane.f32.xlu0 %v185
    %v187 = vpop.xlane.xlu0 %186
    %v188 = vsub.f32 %v184, %v187
    %v189 = vmul.f32 %v188, 1.442695
    %v190 = vpow.pop %v189
    %v191 = vsel %vm160, %v190, 0.0
    %192 = vadd.xlane.f32.xlu0 %v191
    %v193 = vpop.xlane.xlu0 %192
    %v194 = vrcp.pop %v193
    %v195 = vmul.f32 %v190, %v194
    %196 = vst.msk [vmem:[#allocation2] sm:$0xff] %vm160, %v195
    // Predicated region
    $region30: #{tpu_custom_call.1} parent=1 // pred_check
      _
    $region31: #{tpu_custom_call.1} parent=1 // pred_check_branch
      %198 = sbr.rel (0) target = $region33
    $region32: #{tpu_custom_call.1} parent=1 // pred_region
      %200 = vsyncadd [#allocation3], 0
      %s202 = sshll.u32 [#allocation2], 4
      %s203 = int_to_ptr.vmem [resolvable:$true] %s202
      %s204 = sshll.u32 %s7, 4
      %s205 = int_to_ptr.hbm [resolvable:$true] %s204
      %207 = dma.vmem_to_hbm [thread:$0]  %s203, 128, %s205, [#allocation3]
    $region33: #{tpu_custom_call.1} parent=1 // pred_fallthru
      _
    // Predicated region
    $region34: #{tpu_custom_call.1} parent=1 // pred_check
      _
    $region35: #{tpu_custom_call.1} parent=1 // pred_check_branch
      %209 = sbr.rel (0) target = $region37
    $region36: #{tpu_custom_call.1} parent=1 // pred_region
      %211 = dma.done [#allocation3], 128
    $region37: #{tpu_custom_call.1} parent=1 // pred_fallthru
      _
    %212 = vsyncpa [#allocation3], 1

</llo_original>
